<compile_context>
chip_gen: v5e
topology: v5e:2x2
jax: 0.10.0
libtpu: 0.0.40
codegen_flags: <defaults>
</compile_context>

<pallas_src>
import jax
import jax.numpy as jnp
from jax import lax
from jax.experimental import pallas as pl
from jax.experimental.pallas import tpu as pltpu


# ----------------------- generation-aware budgets ---------------------------
def _hw_budget():
    """(vmem_limit_bytes, node_tile_target) tuned per TPU generation."""
    vmem_cap = 64 * 1024 * 1024            # conservative default (v7x per-TC)
    try:
        info = pltpu.get_tpu_info()
        cap = getattr(info, "vmem_capacity_bytes", None)
        if cap:
            vmem_cap = int(cap)
    except Exception:
        pass
    if vmem_cap >= 100 * 1024 * 1024:      # v5e / v6e: 128 MiB physical VMEM
        return 96 * 1024 * 1024, 1024
    return 48 * 1024 * 1024, 256           # v7x: 64 MiB physical -> leave headroom


def _node_tiling(n, tile_target, two_h, vmem_limit):
    """Pick node tile tm and padded node count Np (multiple of tm).

    Keeps 2x bf16 op tiles + resident bf16 ft + 2x2 bf16 h output buffers within
    ~75% of the VMEM budget; pads N to a tile multiple when it has no divisor."""
    if n <= tile_target:
        return n, n                         # single tile, block == full dims
    h = two_h // 2
    tm = (tile_target // 128) * 128
    while tm > 128:
        npad = pl.cdiv(n, tm) * tm
        need = (2 * tm * npad * 2           # double-buffered bf16 op tiles
                + 2 * npad * two_h * 2      # buffered bf16 ft block
                + 2 * 2 * tm * h * 2)       # two bf16 h outputs, double-buffered
        if need <= int(vmem_limit * 0.75):
            break
        tm -= 128
    tm = max(tm, 128)
    npad = pl.cdiv(n, tm) * tm
    return tm, npad


# -------------------- fused GCN-pair propagation kernel ---------------------
# For one graph operator `op` (adj or diff) and one set of GCN params, the
# projected features of BOTH views are stacked as ft = [seq1@W | seq2@W], so op
# is read from HBM once and one bf16 MXU matmul propagates both views:
#   hA = PReLU(op @ ft[:, :H] + b)     (h1 or h2)
#   hB = PReLU(op @ ft[:, H:] + b)     (h3 or h4)
def gcn_pair_kernel(ft_ref, op_ref, b_ref, alpha_ref, hA_ref, hB_ref):
    H = hA_ref.shape[2]
    # bf16 x bf16 -> f32 accumulate on the MXU.
    out = jnp.dot(op_ref[0], ft_ref[0], preferred_element_type=jnp.float32)
    alpha = alpha_ref[0, 0]                  # SMEM scalar (PReLU slope)
    bvec = b_ref[...]                        # (1, H) f32
    hA = out[:, :H] + bvec
    hB = out[:, H:] + bvec
    hA = jnp.where(hA > 0, hA, alpha * hA)   # PReLU in f32
    hB = jnp.where(hB > 0, hB, alpha * hB)
    hA_ref[0] = hA.astype(hA_ref.dtype)      # bf16 writeback
    hB_ref[0] = hB.astype(hB_ref.dtype)


def gcn_pair_forward(ft, op, b, alpha, *, tm, vmem_limit):
    B, Np, twoH = ft.shape
    H = twoH // 2
    nt = Np // tm
    return pl.pallas_call(
        gcn_pair_kernel,
        out_shape=(jax.ShapeDtypeStruct((B, Np, H), jnp.bfloat16),
                   jax.ShapeDtypeStruct((B, Np, H), jnp.bfloat16)),
        grid_spec=pltpu.PrefetchScalarGridSpec(
            num_scalar_prefetch=0,
            grid=(B, nt),
            in_specs=[
                # ft block index is constant along the node-tile axis -> DMA'd
                # once per batch element, prefetched ahead for batch b+1.
                pl.BlockSpec((1, Np, twoH), lambda bi, ti: (bi, 0, 0)),
                # TODO(synk): if the op DMA becomes exposed on v7x after the bf16
                #             change, add pipeline_mode=pl.Buffered(3) here.
                pl.BlockSpec((1, tm, Np), lambda bi, ti: (bi, ti, 0)),
                pl.BlockSpec((1, H), lambda bi, ti: (0, 0)),
                pl.BlockSpec(memory_space=pltpu.MemorySpace.SMEM),   # PReLU alpha
            ],
            out_specs=[
                pl.BlockSpec((1, tm, H), lambda bi, ti: (bi, ti, 0)),
                pl.BlockSpec((1, tm, H), lambda bi, ti: (bi, ti, 0)),
            ],
        ),
        # No cross-tile dependency (readout moved to the wrapper) -> fully parallel;
        # on v7x both TensorCores stay busy even at B=1.
        compiler_params=pltpu.CompilerParams(
            dimension_semantics=("parallel", "parallel"),
            vmem_limit_bytes=vmem_limit,
        ),
    )(ft, op, b, alpha)


# ------------------------ Discriminator kernel ------------------------------
# nn.Bilinear(n_h, n_h, 1): score(x1, x2) = x1 @ W @ x2 + bias.
# With v = [W@c1 | W@c2] (H, 2) precomputed, each score row is one row of the
# (2, tm) = v^T @ h^T matvec; contraction on H keeps the node axis on lanes so
# the (1, 4, tm) output block is written lane-dense in one store.
def disc_kernel(h1_ref, h2_ref, h3_ref, h4_ref, v_ref, bd_ref, o_ref):
    v = v_ref[0]                             # (H, 2) bf16: columns [W@c1, W@c2]
    bias = bd_ref[0, 0]                      # SMEM f32 scalar

    def scores(h_ref):                       # -> (2, tm) f32
        return lax.dot_general(v, h_ref[0], (((0,), (1,)), ((), ())),
                               preferred_element_type=jnp.float32)

    s1 = scores(h1_ref)
    s2 = scores(h2_ref)
    s3 = scores(h3_ref)
    s4 = scores(h4_ref)

    # TODO(synk): samp_bias1 / samp_bias2 additive terms omitted (None here).
    o_ref[0] = jnp.concatenate(
        [s2[0:1],      # sc_1 = f_k(h2, c1)
         s1[1:2],      # sc_2 = f_k(h1, c2)
         s4[0:1],      # sc_3 = f_k(h4, c1)
         s3[1:2]],     # sc_4 = f_k(h3, c2)
        axis=0) + bias


def disc_forward(h1, h2, h3, h4, v, bd, *, tm, vmem_limit):
    B, Np, H = h1.shape
    nt = Np // tm
    return pl.pallas_call(
        disc_kernel,
        out_shape=jax.ShapeDtypeStruct((B, 4, Np), jnp.float32),
        grid_spec=pltpu.PrefetchScalarGridSpec(
            num_scalar_prefetch=0,
            grid=(B, nt),
            in_specs=(
                [pl.BlockSpec((1, tm, H), lambda bi, ti: (bi, ti, 0))] * 4
                + [pl.BlockSpec((1, H, 2), lambda bi, ti: (bi, 0, 0)),
                   pl.BlockSpec(memory_space=pltpu.MemorySpace.SMEM)]   # bilinear bias
            ),
            out_specs=pl.BlockSpec((1, 4, tm), lambda bi, ti: (bi, 0, ti)),
        ),
        compiler_params=pltpu.CompilerParams(
            dimension_semantics=("parallel", "parallel"),
            vmem_limit_bytes=vmem_limit,
        ),
    )(h1, h2, h3, h4, v, bd)


# ------------------------------ Model glue ----------------------------------
def init_params(key, n_in, n_h):
    k = jax.random.split(key, 4)
    return {
        # GCN1 / GCN2: Linear(n_in, n_h, bias=False) + bias param + PReLU(0.25)
        "w1": jax.random.normal(k[0], (n_in, n_h), jnp.float32) * 0.1,
        "b1": jnp.zeros((1, n_h), jnp.float32),
        "a1": jnp.full((1, 1), 0.25, jnp.float32),
        "w2": jax.random.normal(k[1], (n_in, n_h), jnp.float32) * 0.1,
        "b2": jnp.zeros((1, n_h), jnp.float32),
        "a2": jnp.full((1, 1), 0.25, jnp.float32),
        # Discriminator: Bilinear(n_h, n_h, 1)
        "wd": jax.random.normal(k[2], (n_h, n_h), jnp.float32) * 0.1,
        "bd": jax.random.normal(k[3], (1, 1), jnp.float32) * 0.1,
    }


def mvgrl_forward(params, seq1, seq2, adj, diff,
                  sparse=False, msk=None, samp_bias1=None, samp_bias2=None):
    # sparse=False / msk=None / samp_bias=None paths only (as invoked here).
    B, N, _ = seq1.shape
    H = params["w1"].shape[1]

    vmem_limit, tile_target = _hw_budget()
    tm, Np = _node_tiling(N, tile_target, 2 * H, vmem_limit)
    pad = Np - N

    # Hoisted projection: ft_k = [seq1@W_k | seq2@W_k], cast to bf16 (review item 1+2).
    def project(w):
        ft = jnp.concatenate([seq1 @ w, seq2 @ w], axis=-1)     # (B, N, 2H) f32
        if pad:
            ft = jnp.pad(ft, ((0, 0), (0, pad), (0, 0)))
        return ft.astype(jnp.bfloat16)

    ft1 = project(params["w1"])
    ft2 = project(params["w2"])

    if pad:
        adj = jnp.pad(adj, ((0, 0), (0, pad), (0, pad)))
        diff = jnp.pad(diff, ((0, 0), (0, pad), (0, pad)))
    adj_b = adj.astype(jnp.bfloat16)
    diff_b = diff.astype(jnp.bfloat16)

    # Views sharing a graph operator are fused into one kernel call:
    #   h1 = gcn1(seq1, adj), h3 = gcn1(seq2, adj)   ->  one pass over adj
    #   h2 = gcn2(seq1, diff), h4 = gcn2(seq2, diff) ->  one pass over diff
    h1p, h3p = gcn_pair_forward(ft1, adj_b, params["b1"], params["a1"],
                                tm=tm, vmem_limit=vmem_limit)
    h2p, h4p = gcn_pair_forward(ft2, diff_b, params["b2"], params["a2"],
                                tm=tm, vmem_limit=vmem_limit)

    # AvgReadout + Sigmoid + bilinear factor v = W@c: tiny per-batch math in XLA.
    h1 = h1p[:, :N].astype(jnp.float32)
    h2 = h2p[:, :N].astype(jnp.float32)
    c1 = jax.nn.sigmoid(jnp.mean(h1, axis=1))                    # (B, H)
    c2 = jax.nn.sigmoid(jnp.mean(h2, axis=1))
    wd = params["wd"]
    v1 = jnp.einsum("hk,bk->bh", wd, c1)                         # W @ c1
    v2 = jnp.einsum("hk,bk->bh", wd, c2)                         # W @ c2
    v = jnp.stack([v1, v2], axis=-1).astype(jnp.bfloat16)        # (B, H, 2)

    ret_p = disc_forward(h1p, h2p, h3p, h4p, v, params["bd"],
                         tm=tm, vmem_limit=vmem_limit)           # (B, 4, Np)
    ret = ret_p[:, :, :N].reshape(B, 4 * N)   # matches torch.cat((sc1..sc4), dim=1)
    return ret, h1, h2


# --------------------------- pure-JAX reference ------------------------------
def ref_forward(params, seq1, seq2, adj, diff):
    def gcn(seq, a, w, b, alpha):
        out = jnp.einsum("bij,bjh->bih", a, seq @ w) + b
        return jnp.where(out > 0, out, alpha[0, 0] * out)

    def read_sigm(h):
        return jax.nn.sigmoid(jnp.mean(h, axis=1))

    h1 = gcn(seq1, adj, params["w1"], params["b1"], params["a1"])
    c1 = read_sigm(h1)
    h2 = gcn(seq1, diff, params["w2"], params["b2"], params["a2"])
    c2 = read_sigm(h2)
    h3 = gcn(seq2, adj, params["w1"], params["b1"], params["a1"])
    h4 = gcn(seq2, diff, params["w2"], params["b2"], params["a2"])

    def bil(h, c):
        return jnp.einsum("bnh,hk,bk->bn", h, params["wd"], c) + params["bd"][0, 0]

    logits = jnp.concatenate(
        [bil(h2, c1), bil(h1, c2), bil(h4, c1), bil(h3, c2)], axis=1)
    return logits, h1, h2


if __name__ == "__main__":
    B, N, n_in, n_h = 2, 16, 8, 32
    key = jax.random.PRNGKey(0)
    k1, k2, k3, k4, kp = jax.random.split(key, 5)

    seq1 = jax.random.normal(k1, (B, N, n_in), jnp.float32)
    seq2 = jax.random.normal(k2, (B, N, n_in), jnp.float32)
    adj = jax.random.uniform(k3, (B, N, N), jnp.float32) / N
    diff = jax.random.uniform(k4, (B, N, N), jnp.float32) / N

    params = init_params(kp, n_in, n_h)

    ret, h1, h2 = mvgrl_forward(params, seq1, seq2, adj, diff,
                                sparse=False, msk=None,
                                samp_bias1=None, samp_bias2=None)
    jax.block_until_ready((ret, h1, h2))

    ret_r, h1_r, h2_r = ref_forward(params, seq1, seq2, adj, diff)
    assert ret.shape == (B, 4 * N) and h1.shape == (B, N, n_h)
    # bf16 matmul / bf16 h storage -> compare against the f32 reference with a
    # tolerance sized to bf16 rounding error.
    assert jnp.allclose(ret, ret_r, atol=2e-2, rtol=2e-2)
    assert jnp.allclose(h1, h1_r, atol=1e-2, rtol=1e-2)
    assert jnp.allclose(h2, h2_r, atol=1e-2, rtol=1e-2)

    print("KERNEL_OK")
</pallas_src>

<mosaic_0001>
module attributes {stable_mosaic.version = 11 : i64} {
  func.func @gcn_pair_kernel(%arg0: i32, %arg1: i32, %arg2: memref<1x16x64xbf16, #tpu.memory_space<vmem>>, %arg3: memref<1x16x16xbf16, #tpu.memory_space<vmem>>, %arg4: memref<1x32xf32, #tpu.memory_space<vmem>>, %arg5: memref<1x1xf32, #tpu.memory_space<smem>>, %arg6: memref<1x16x32xbf16, #tpu.memory_space<vmem>>, %arg7: memref<1x16x32xbf16, #tpu.memory_space<vmem>>) attributes {dimension_semantics = [#tpu.dimension_semantics<parallel>, #tpu.dimension_semantics<parallel>], iteration_bounds = array<i64: 2, 1>, scalar_prefetch = 0 : i64, scratch_operands = 0 : i64, tpu.core_type = #tpu.core_type<tc>, window_params = [{transform_indices = @transform_0, window_bounds = array<i64: 1, 16, 64>}, {transform_indices = @transform_1, window_bounds = array<i64: 1, 16, 16>}, {pipeline_mode = #tpu.pipeline_mode<synchronous>, transform_indices = @transform_2, window_bounds = array<i64: 1, 32>}, {transform_indices = @transform_3, window_bounds = array<i64: 1, 1>}, {transform_indices = @transform_4, window_bounds = array<i64: 1, 16, 32>}, {transform_indices = @transform_5, window_bounds = array<i64: 1, 16, 32>}]} {
    %c0 = arith.constant 0 : index
    %c0_0 = arith.constant 0 : index
    %c0_1 = arith.constant 0 : index
    %0 = vector.load %arg3[%c0, %c0_0, %c0_1] : memref<1x16x16xbf16, #tpu.memory_space<vmem>>, vector<1x16x16xbf16>
    %1 = vector.shape_cast %0 : vector<1x16x16xbf16> to vector<16x16xbf16>
    %c0_2 = arith.constant 0 : index
    %c0_3 = arith.constant 0 : index
    %c0_4 = arith.constant 0 : index
    %2 = vector.load %arg2[%c0_2, %c0_3, %c0_4] : memref<1x16x64xbf16, #tpu.memory_space<vmem>>, vector<1x16x64xbf16>
    %3 = vector.shape_cast %2 : vector<1x16x64xbf16> to vector<16x64xbf16>
    %cst = arith.constant dense<0.000000e+00> : vector<16x64xf32>
    %4 = tpu.matmul %1, %3, %cst {dimension_numbers = #tpu.dot_dimension_numbers<[1], [0], [0], [1], [0, 0, 1, 1], [], []>} : vector<16x16xbf16>, vector<16x64xbf16>, vector<16x64xf32> -> vector<16x64xf32>
    %c0_5 = arith.constant 0 : index
    %c0_6 = arith.constant 0 : index
    %5 = memref.load %arg5[%c0_5, %c0_6] : memref<1x1xf32, #tpu.memory_space<smem>>
    %c0_7 = arith.constant 0 : index
    %c0_8 = arith.constant 0 : index
    %6 = vector.load %arg4[%c0_7, %c0_8] : memref<1x32xf32, #tpu.memory_space<vmem>>, vector<1x32xf32>
    %7 = vector.extract_strided_slice %4 {offsets = [0, 0], sizes = [16, 32], strides = [1, 1]} : vector<16x64xf32> to vector<16x32xf32>
    %8 = vector.broadcast %6 : vector<1x32xf32> to vector<16x32xf32>
    %9 = arith.addf %7, %8 : vector<16x32xf32>
    %10 = vector.extract_strided_slice %4 {offsets = [0, 32], sizes = [16, 32], strides = [1, 1]} : vector<16x64xf32> to vector<16x32xf32>
    %11 = vector.broadcast %6 : vector<1x32xf32> to vector<16x32xf32>
    %12 = arith.addf %10, %11 : vector<16x32xf32>
    %cst_9 = arith.constant 0.000000e+00 : f32
    %13 = vector.broadcast %cst_9 : f32 to vector<16x32xf32>
    %14 = arith.cmpf ogt, %9, %13 : vector<16x32xf32>
    %15 = vector.broadcast %5 : f32 to vector<16x32xf32>
    %16 = arith.mulf %15, %9 : vector<16x32xf32>
    %17 = arith.select %14, %9, %16 : vector<16x32xi1>, vector<16x32xf32>
    %cst_10 = arith.constant 0.000000e+00 : f32
    %18 = vector.broadcast %cst_10 : f32 to vector<16x32xf32>
    %19 = arith.cmpf ogt, %12, %18 : vector<16x32xf32>
    %20 = vector.broadcast %5 : f32 to vector<16x32xf32>
    %21 = arith.mulf %20, %12 : vector<16x32xf32>
    %22 = arith.select %19, %12, %21 : vector<16x32xi1>, vector<16x32xf32>
    %23 = arith.truncf %17 : vector<16x32xf32> to vector<16x32xbf16>
    %c0_11 = arith.constant 0 : index
    %c0_12 = arith.constant 0 : index
    %c0_13 = arith.constant 0 : index
    %24 = vector.load %arg6[%c0_11, %c0_12, %c0_13] : memref<1x16x32xbf16, #tpu.memory_space<vmem>>, vector<1x16x32xbf16>
    %25 = vector.shape_cast %24 : vector<1x16x32xbf16> to vector<16x32xbf16>
    %26 = vector.shape_cast %23 : vector<16x32xbf16> to vector<1x16x32xbf16>
    tpu.vector_store %arg6[%c0_11, %c0_12, %c0_13], %26 {strides = array<i32>} : memref<1x16x32xbf16, #tpu.memory_space<vmem>>, vector<1x16x32xbf16>,
    %27 = arith.truncf %22 : vector<16x32xf32> to vector<16x32xbf16>
    %c0_14 = arith.constant 0 : index
    %c0_15 = arith.constant 0 : index
    %c0_16 = arith.constant 0 : index
    %28 = vector.load %arg7[%c0_14, %c0_15, %c0_16] : memref<1x16x32xbf16, #tpu.memory_space<vmem>>, vector<1x16x32xbf16>
    %29 = vector.shape_cast %28 : vector<1x16x32xbf16> to vector<16x32xbf16>
    %30 = vector.shape_cast %27 : vector<16x32xbf16> to vector<1x16x32xbf16>
    tpu.vector_store %arg7[%c0_14, %c0_15, %c0_16], %30 {strides = array<i32>} : memref<1x16x32xbf16, #tpu.memory_space<vmem>>, vector<1x16x32xbf16>,
    return
  }
  func.func @transform_0(%arg0: i32, %arg1: i32) -> (i32, i32, i32) {
    %c0_i32 = arith.constant 0 : i32
    %c0_i32_0 = arith.constant 0 : i32
    %c0_i32_1 = arith.constant 0 : i32
    return %arg0, %c0_i32, %c0_i32_0 : i32, i32, i32
  }
  func.func @transform_1(%arg0: i32, %arg1: i32) -> (i32, i32, i32) {
    %c0_i32 = arith.constant 0 : i32
    %c0_i32_0 = arith.constant 0 : i32
    return %arg0, %arg1, %c0_i32 : i32, i32, i32
  }
  func.func @transform_2(%arg0: i32, %arg1: i32) -> (i32, i32) {
    %c0_i32 = arith.constant 0 : i32
    %c0_i32_0 = arith.constant 0 : i32
    %c0_i32_1 = arith.constant 0 : i32
    return %c0_i32, %c0_i32_0 : i32, i32
  }
  func.func @transform_3(%arg0: i32, %arg1: i32) -> (i32, i32) {
    %c0_i32 = arith.constant 0 : i32
    %c0_i32_0 = arith.constant 0 : i32
    %c0_i32_1 = arith.constant 0 : i32
    return %c0_i32, %c0_i32_0 : i32, i32
  }
  func.func @transform_4(%arg0: i32, %arg1: i32) -> (i32, i32, i32) {
    %c0_i32 = arith.constant 0 : i32
    %c0_i32_0 = arith.constant 0 : i32
    return %arg0, %arg1, %c0_i32 : i32, i32, i32
  }
  func.func @transform_5(%arg0: i32, %arg1: i32) -> (i32, i32, i32) {
    %c0_i32 = arith.constant 0 : i32
    %c0_i32_0 = arith.constant 0 : i32
    return %arg0, %arg1, %c0_i32 : i32, i32, i32
  }
}

</mosaic_0001>

<llo_original>
// kernel: tpu_custom_call.1
$region0: #{tpu_custom_call.1}
  #allocation0 [shape = 'u32[]', space=smem, size = 0x4, offset = 0x4, fixed_abs, tag = 'smem constant byte address 0x4 - core index']
  #allocation1 [shape = 'u32[72,128]{1,0:T(1,128)}', space=vmem, size = 0x9000, scoped, tag = 'internal scratch']
  #allocation2 [shape = 'f32[1,1]{1,0:T(1,128)S(6)}', space=smem, size = 0x200, scoped, tag = 'scoped memory for tpu_custom_call.1']
  %s0 = inlined_call_operand.hbm [shape: bf16[2,16,64], index: 0, kind: input, shape index: {}]
  %s1 = inlined_call_operand.hbm [shape: bf16[2,16,16], index: 1, kind: input, shape index: {}]
  %s2 = inlined_call_operand.vmem [shape: f32[1,32], index: 2, kind: input, shape index: {}]
  %s3 = inlined_call_operand.<no memory space> [shape: f32[1,1], index: 3, kind: input, shape index: {}]
  %s4 = inlined_call_operand.hbm [shape: bf16[2,16,32], index: 4, kind: output, shape index: {0}]
  %s5 = inlined_call_operand.hbm [shape: bf16[2,16,32], index: 5, kind: output, shape index: {1}]
  %6 = xla_tuple %s4, %s5
  %s7 = sld [smem:[#allocation0]]
  $region65: #{tpu_custom_call.1} parent=0
    _
  %s9 = ssub.s32 1, %s7
  %s10 = scalar_select 0, %s9, %s7
  %11 = sst [smem:[#allocation2]] %s3
  $region1: #{tpu_custom_call.1} parent=0
    #allocation3 [shape = 'u8[8192]{0}', space=vmem, size = 0x2000, scoped, tag = 'input window, operand 0']
    #allocation4 [shape = 's32[2]{0}', space=sflag, size = 0x8, scoped, tag = 'scoped memory for tpu_custom_call.1']
    #allocation5 [shape = 's32[2]{0}', space=sflag, size = 0x8, scoped, tag = 'scoped memory for tpu_custom_call.1']
    #allocation6 [shape = 'u8[8192]{0}', space=vmem, size = 0x2000, scoped, tag = 'input window, operand 1']
    #allocation7 [shape = 's32[2]{0}', space=sflag, size = 0x8, scoped, tag = 'scoped memory for tpu_custom_call.1']
    #allocation8 [shape = 'u8[8192]{0}', space=vmem, size = 0x2000, scoped, tag = 'output window, operand 0']
    #allocation9 [shape = 'u8[8192]{0}', space=vmem, size = 0x2000, scoped, tag = 'output window, operand 1']
    #allocation10 [shape = 's32[2]{0}', space=sflag, size = 0x8, scoped, tag = 'scoped memory for tpu_custom_call.1']
    %12 = vsyncpa [#allocation4], 0
    %s13 = scalar_lea.sflag [#allocation4], 1
    %14 = vsyncpa %s13, 0
    %15 = vsyncpa [#allocation7], 0
    %s16 = scalar_lea.sflag [#allocation7], 1
    %17 = vsyncpa %s16, 0
    %18 = vsyncpa [#allocation5], 0
    %s19 = scalar_lea.sflag [#allocation5], 1
    %20 = vsyncpa %s19, 0
    %21 = vsyncpa [#allocation10], 0
    %s22 = scalar_lea.sflag [#allocation10], 1
    %23 = vsyncpa %s22, 0
    loop: start=0, step=1, limit=4
    $region2: #{tpu_custom_call.1} parent=1 // loop_pre_header
      _
    $region3: #{tpu_custom_call.1} parent=1 // loop_header
      %s25 = sphi 0, %s29
      %p26 = scmp.ge.s32.totalorder %s25, 4
      %s32 = sphi 0, %s44
      %s33 = sphi 0, %s40
      %s34 = sphi 0, %s32
      %s35 = sphi 0, %s33
      %s36 = sphi 0, %s34
      %s37 = sphi 0, %s35
      %s47 = sphi 0, %s49
      %s50 = sphi 0, %s47
      %s51 = sphi 0, %s50
      %s67 = sphi 0, %s51
      %s75 = sphi 0, %s77
      %s78 = sphi 0, %s75
      %s79 = sphi 0, %s78
      %s95 = sphi 0, %s79
      %s99 = sphi 0, %s99
      %s101 = sphi 0, %s99
      %s102 = sphi 0, %s101
      %s116 = sphi 0, %s102
      %s120 = sphi 0, %s120
      %s122 = sphi 0, %s120
      %s123 = sphi 0, %s122
      %s137 = sphi 0, %s123
      %s145 = sphi 0, %s147
      %s148 = sphi 0, %s145
      %s149 = sphi 0, %s148
      %s165 = sphi 0, %s149
      %s173 = sphi 0, %s175
      %s176 = sphi 0, %s173
      %s177 = sphi 0, %s176
      %s193 = sphi 0, %s177
    $region4: #{tpu_custom_call.1} parent=1 // loop_header_branch
      %28 = sbr.rel (%p26) target = $region8
    $region5: #{tpu_custom_call.1} parent=1 // loop_body
      %s30 = ssub.s32 %s25, 1
      %s31 = ssub.s32 %s25, 2
      %s38 = sadd.s32 1, %s33
      %p39 = scmp.ge.s32.totalorder %s38, 1
      %s40 = scalar_select %p39, 0, %s38
      %s41 = sadd.s32 1, %s32
      %s42 = scalar_select %p39, %s41, %s32
      %p43 = scmp.ge.s32.totalorder %s42, 2
      %s44 = scalar_select %p43, 0, %s42
      %s45 = ssub.s32 %s32, %s44
      %p46 = scmp.eq.s32.totalorder %s45, 0
      %s48 = sadd.s32 %s47, 1
      %s49 = scalar_select %p46, %s47, %s48
      %p52 = pneg %p46
      %p53 = scmp.eq.s32.totalorder %s25, 1
      %p54 = por %p52, %p53
      %p55 = scmp.ne.s32.totalorder %s47, %s50
      %p56 = scmp.eq.s32.totalorder %s25, 0
      %p57 = por %p55, %p56
      %p58 = scmp.ne.s32.totalorder %s47, %s50
      %p59 = scmp.eq.s32.totalorder %s30, 1
      %p60 = por %p58, %p59
      %p61 = scmp.ne.s32.totalorder %s50, %s51
      %p62 = scmp.eq.s32.totalorder %s30, 0
      %p63 = por %p61, %p62
      %p64 = scmp.ne.s32.totalorder %s50, %s51
      %p65 = scmp.eq.s32.totalorder %s31, 1
      %p66 = por %p64, %p65
      %p68 = scmp.ne.s32.totalorder %s51, %s67
      %p69 = scmp.eq.s32.totalorder %s31, 0
      %p70 = por %p68, %p69
      %s71 = ssub.s32 %s32, %s44
      %s72 = ssub.s32 %s33, %s40
      %s73 = sor.u32 %s71, %s72
      %p74 = scmp.eq.s32.totalorder %s73, 0
      %s76 = sadd.s32 %s75, 1
      %s77 = scalar_select %p74, %s75, %s76
      %p80 = pneg %p74
      %p81 = scmp.eq.s32.totalorder %s25, 1
      %p82 = por %p80, %p81
      %p83 = scmp.ne.s32.totalorder %s75, %s78
      %p84 = scmp.eq.s32.totalorder %s25, 0
      %p85 = por %p83, %p84
      %p86 = scmp.ne.s32.totalorder %s75, %s78
      %p87 = scmp.eq.s32.totalorder %s30, 1
      %p88 = por %p86, %p87
      %p89 = scmp.ne.s32.totalorder %s78, %s79
      %p90 = scmp.eq.s32.totalorder %s30, 0
      %p91 = por %p89, %p90
      %p92 = scmp.ne.s32.totalorder %s78, %s79
      %p93 = scmp.eq.s32.totalorder %s31, 1
      %p94 = por %p92, %p93
      %p96 = scmp.ne.s32.totalorder %s79, %s95
      %p97 = scmp.eq.s32.totalorder %s31, 0
      %p98 = por %p96, %p97
      %s100 = sadd.s32 %s99, 1
      %p103 = scmp.eq.s32.totalorder %s25, 1
      %p104 = scmp.ne.s32.totalorder %s99, %s101
      %p105 = scmp.eq.s32.totalorder %s25, 0
      %p106 = por %p104, %p105
      %p107 = scmp.ne.s32.totalorder %s99, %s101
      %p108 = scmp.eq.s32.totalorder %s30, 1
      %p109 = por %p107, %p108
      %p110 = scmp.ne.s32.totalorder %s101, %s102
      %p111 = scmp.eq.s32.totalorder %s30, 0
      %p112 = por %p110, %p111
      %p113 = scmp.ne.s32.totalorder %s101, %s102
      %p114 = scmp.eq.s32.totalorder %s31, 1
      %p115 = por %p113, %p114
      %p117 = scmp.ne.s32.totalorder %s102, %s116
      %p118 = scmp.eq.s32.totalorder %s31, 0
      %p119 = por %p117, %p118
      %s121 = sadd.s32 %s120, 1
      %p124 = scmp.eq.s32.totalorder %s25, 1
      %p125 = scmp.ne.s32.totalorder %s120, %s122
      %p126 = scmp.eq.s32.totalorder %s25, 0
      %p127 = por %p125, %p126
      %p128 = scmp.ne.s32.totalorder %s120, %s122
      %p129 = scmp.eq.s32.totalorder %s30, 1
      %p130 = por %p128, %p129
      %p131 = scmp.ne.s32.totalorder %s122, %s123
      %p132 = scmp.eq.s32.totalorder %s30, 0
      %p133 = por %p131, %p132
      %p134 = scmp.ne.s32.totalorder %s122, %s123
      %p135 = scmp.eq.s32.totalorder %s31, 1
      %p136 = por %p134, %p135
      %p138 = scmp.ne.s32.totalorder %s123, %s137
      %p139 = scmp.eq.s32.totalorder %s31, 0
      %p140 = por %p138, %p139
      %s141 = ssub.s32 %s32, %s44
      %s142 = ssub.s32 %s33, %s40
      %s143 = sor.u32 %s141, %s142
      %p144 = scmp.eq.s32.totalorder %s143, 0
      %s146 = sadd.s32 %s145, 1
      %s147 = scalar_select %p144, %s145, %s146
      %p150 = pneg %p144
      %p151 = scmp.eq.s32.totalorder %s25, 1
      %p152 = por %p150, %p151
      %p153 = scmp.ne.s32.totalorder %s145, %s148
      %p154 = scmp.eq.s32.totalorder %s25, 0
      %p155 = por %p153, %p154
      %p156 = scmp.ne.s32.totalorder %s145, %s148
      %p157 = scmp.eq.s32.totalorder %s30, 1
      %p158 = por %p156, %p157
      %p159 = scmp.ne.s32.totalorder %s148, %s149
      %p160 = scmp.eq.s32.totalorder %s30, 0
      %p161 = por %p159, %p160
      %p162 = scmp.ne.s32.totalorder %s148, %s149
      %p163 = scmp.eq.s32.totalorder %s31, 1
      %p164 = por %p162, %p163
      %p166 = scmp.ne.s32.totalorder %s149, %s165
      %p167 = scmp.eq.s32.totalorder %s31, 0
      %p168 = por %p166, %p167
      %s169 = ssub.s32 %s32, %s44
      %s170 = ssub.s32 %s33, %s40
      %s171 = sor.u32 %s169, %s170
      %p172 = scmp.eq.s32.totalorder %s171, 0
      %s174 = sadd.s32 %s173, 1
      %s175 = scalar_select %p172, %s173, %s174
      %p178 = pneg %p172
      %p179 = scmp.eq.s32.totalorder %s25, 1
      %p180 = por %p178, %p179
      %p181 = scmp.ne.s32.totalorder %s173, %s176
      %p182 = scmp.eq.s32.totalorder %s25, 0
      %p183 = por %p181, %p182
      %p184 = scmp.ne.s32.totalorder %s173, %s176
      %p185 = scmp.eq.s32.totalorder %s30, 1
      %p186 = por %p184, %p185
      %p187 = scmp.ne.s32.totalorder %s176, %s177
      %p188 = scmp.eq.s32.totalorder %s30, 0
      %p189 = por %p187, %p188
      %p190 = scmp.ne.s32.totalorder %s176, %s177
      %p191 = scmp.eq.s32.totalorder %s31, 1
      %p192 = por %p190, %p191
      %p194 = scmp.ne.s32.totalorder %s177, %s193
      %p195 = scmp.eq.s32.totalorder %s31, 0
      %p196 = por %p194, %p195
      %p197 = scmp.le.s32.totalorder 1, %s25
      %p198 = scmp.lt.s32.totalorder %s25, 3
      %p199 = pnand %p197, %p198
      %p200 = pneg %p199
      // Predicated region
      $region9: #{tpu_custom_call.1} parent=5 // pred_check
        _
      $region10: #{tpu_custom_call.1} parent=5 // pred_check_branch
        %202 = sbr.rel (%p199) target = $region12
      $region11: #{tpu_custom_call.1} parent=5 // pred_region
        %s203 = ssub.s32 %s25, 1
        // Predicated region
        $region13: #{tpu_custom_call.1} parent=11 // pred_check
          %p204 = pneg %p112
        $region14: #{tpu_custom_call.1} parent=11 // pred_check_branch
          %206 = sbr.rel (%p204) target = $region16
        $region15: #{tpu_custom_call.1} parent=11 // pred_region
          _
        $region16: #{tpu_custom_call.1} parent=11 // pred_fallthru
          _
        // Predicated region
        $region17: #{tpu_custom_call.1} parent=11 // pred_check
          %p207 = pneg %p133
        $region18: #{tpu_custom_call.1} parent=11 // pred_check_branch
          %209 = sbr.rel (%p207) target = $region20
        $region19: #{tpu_custom_call.1} parent=11 // pred_region
          _
        $region20: #{tpu_custom_call.1} parent=11 // pred_fallthru
          _
      $region12: #{tpu_custom_call.1} parent=5 // pred_fallthru
        _
      %p210 = scmp.lt.s32.totalorder %s25, 2
      // Predicated region
      $region21: #{tpu_custom_call.1} parent=5 // pred_check
        %p211 = pneg %p210
      $region22: #{tpu_custom_call.1} parent=5 // pred_check_branch
        %213 = sbr.rel (%p211) target = $region24
      $region23: #{tpu_custom_call.1} parent=5 // pred_region
        // Predicated region
        $region25: #{tpu_custom_call.1} parent=23 // pred_check
          %p214 = pneg %p57
        $region26: #{tpu_custom_call.1} parent=23 // pred_check_branch
          %216 = sbr.rel (%p214) target = $region28
        $region27: #{tpu_custom_call.1} parent=23 // pred_region
          %s217 = sand.u32 %s47, 1
          %s218 = scalar_lea.sflag [#allocation4], %s217
          %s219 = sand.u32 %s47, 1
          %s220 = smul.addr %s219, 8
          %s221 = scalar_lea.vmem [#allocation3], %s220
          %223 = vsyncadd %s218, 0
          %s224 = smul.addr %s32, 2
          %s225 = smul.addr %s224, 4
          %s226 = scalar_lea.hbm %s0, %s225
          %s227 = sshll.u32 %s226, 4
          %s228 = int_to_ptr.hbm [resolvable:$true] %s227
          %s229 = sshll.u32 %s221, 4
          %s230 = int_to_ptr.vmem [resolvable:$true] %s229
          %235 = dma.hbm_to_vmem [thread:$0]  %s228, 128, %s230, %s218, 64, 64, 4
        $region28: #{tpu_custom_call.1} parent=23 // pred_fallthru
          _
        // Predicated region
        $region29: #{tpu_custom_call.1} parent=23 // pred_check
          %p236 = pneg %p85
        $region30: #{tpu_custom_call.1} parent=23 // pred_check_branch
          %238 = sbr.rel (%p236) target = $region32
        $region31: #{tpu_custom_call.1} parent=23 // pred_region
          %s239 = sand.u32 %s75, 1
          %s240 = scalar_lea.sflag [#allocation7], %s239
          %s241 = sand.u32 %s75, 1
          %s242 = smul.addr %s241, 8
          %s243 = scalar_lea.vmem [#allocation6], %s242
          %s244 = smul.u32 2, %s33
          %246 = vsyncadd %s240, 0
          %s247 = smul.addr %s32, 2
          %s248 = sadd.s32 %s244, %s247
          %s249 = smul.addr %s248, 4
          %s250 = scalar_lea.hbm %s1, %s249
          %s251 = sshll.u32 %s250, 4
          %s252 = int_to_ptr.hbm [resolvable:$true] %s251
          %s253 = sshll.u32 %s243, 4
          %s254 = int_to_ptr.vmem [resolvable:$true] %s253
          %259 = dma.hbm_to_vmem [thread:$0]  %s252, 128, %s254, %s240, 64, 64, 4
        $region32: #{tpu_custom_call.1} parent=23 // pred_fallthru
          _
      $region24: #{tpu_custom_call.1} parent=5 // pred_fallthru
        _
      %p260 = scmp.le.s32.totalorder 1, %s25
      %p261 = scmp.lt.s32.totalorder %s25, 3
      %p262 = pnand %p260, %p261
      %p263 = pneg %p262
      // Predicated region
      $region33: #{tpu_custom_call.1} parent=5 // pred_check
        _
      $region34: #{tpu_custom_call.1} parent=5 // pred_check_branch
        %265 = sbr.rel (%p262) target = $region36
      $region35: #{tpu_custom_call.1} parent=5 // pred_region
        %s266 = ssub.s32 %s25, 1
        %s267 = sand.u32 %s50, 1
        %s268 = scalar_lea.sflag [#allocation4], %s267
        %s269 = sand.u32 %s50, 1
        %s270 = smul.addr %s269, 8
        %s271 = scalar_lea.vmem [#allocation3], %s270
        // Predicated region
        $region37: #{tpu_custom_call.1} parent=35 // pred_check
          %p272 = pneg %p63
        $region38: #{tpu_custom_call.1} parent=35 // pred_check_branch
          %274 = sbr.rel (%p272) target = $region40
        $region39: #{tpu_custom_call.1} parent=35 // pred_region
          %276 = dma.done %s268, 128
        $region40: #{tpu_custom_call.1} parent=35 // pred_fallthru
          _
        %s277 = sand.u32 %s78, 1
        %s278 = scalar_lea.sflag [#allocation7], %s277
        %s279 = sand.u32 %s78, 1
        %s280 = smul.addr %s279, 8
        %s281 = scalar_lea.vmem [#allocation6], %s280
        // Predicated region
        $region41: #{tpu_custom_call.1} parent=35 // pred_check
          %p282 = pneg %p91
        $region42: #{tpu_custom_call.1} parent=35 // pred_check_branch
          %284 = sbr.rel (%p282) target = $region44
        $region43: #{tpu_custom_call.1} parent=35 // pred_region
          %286 = dma.done %s278, 128
        $region44: #{tpu_custom_call.1} parent=35 // pred_fallthru
          _
        %s287 = sand.u32 %s50, 1
        %s288 = scalar_lea.sflag [#allocation4], %s287
        %s289 = sand.u32 %s50, 1
        %s290 = smul.addr %s289, 8
        %s291 = scalar_lea.vmem [#allocation3], %s290
        %p292 = pneg %p63
        %p293 = pneg %p60
        %s294 = sand.u32 %s78, 1
        %s295 = scalar_lea.sflag [#allocation7], %s294
        %s296 = sand.u32 %s78, 1
        %s297 = smul.addr %s296, 8
        %s298 = scalar_lea.vmem [#allocation6], %s297
        %p299 = pneg %p91
        %p300 = pneg %p88
        %p301 = pneg %p112
        %p302 = pneg %p109
        %p303 = pneg %p133
        %p304 = pneg %p130
        %p305 = pneg %p161
        %p306 = pneg %p158
        %s307 = sand.u32 %s148, 1
        %s308 = scalar_lea.sflag [#allocation5], %s307
        %s309 = sand.u32 %s148, 1
        %s310 = smul.addr %s309, 8
        %s311 = scalar_lea.vmem [#allocation8], %s310
        %p312 = pneg %p189
        %p313 = pneg %p186
        %s314 = sand.u32 %s176, 1
        %s315 = scalar_lea.sflag [#allocation10], %s314
        %s316 = sand.u32 %s176, 1
        %s317 = smul.addr %s316, 8
        %s318 = scalar_lea.vmem [#allocation9], %s317
        %s319 = smul.u32 2, %s35
        %s320 = smul.u32 2, %s35
        %s321 = smul.u32 2, %s35
        %v323 = vld [vmem:[%s281] sm:$0xf]
        %v324 = vld [vmem:[%s281 + $0x4] sm:$0xf]
        %v325 = vld [vmem:[%s271] sm:$0xf]
        %v326 = vld [vmem:[%s271 + $0x4] sm:$0xf]
        %v329 = vunpack.c.l.b16 %v323
        %v330 = vunpack.c.l.b16 %v324
        %v331 = vpack.c.b16 %v330, %v329
        %v334 = vunpack.c.l.b16 %v325
        %v335 = vunpack.c.l.b16 %v326
        %v336 = vpack.c.b16 %v335, %v334
        %vm338 = vcmask 130048
        %v340 = vsel %vm338, %v331, 0
        %342 = vmatpush.bf16.msra.mxu0 0
        %343 = vmatpush.bf16.msra.mxu0 0
        %344 = vmatpush.bf16.msra.mxu0 0
        %345 = vmatpush.bf16.msra.mxu0 0
        %346 = vmatpush.bf16.msra.mxu0 0
        %347 = vmatpush.bf16.msra.mxu0 0
        %348 = vmatpush.bf16.msra.mxu0 0
        %349 = vmatpush.bf16.msra.mxu0 %v336
        %350 = vmatmul.bf16.gmra.mxu0 %v340
        %v351 = vpop.f32.mrf.mxu0
        %v352 = vadd.f32 0.0, %v351
        %v353 = vpop.f32.mrf.mxu0
        %v354 = vadd.f32 0.0, %v353
        %355 = vdwg.mxu0
        %s356 = sld [smem:[#allocation2]]
        %v357 = vld [vmem:[%s2] sm:$0x1]
        %v359 = vperm.slane %v357, 0
        %v361 = vadd.f32 %v352, %v359
        %v362 = vadd.f32 %v354, %v359
        %363 = vrot.lane.b32.xlu0 %v359, 32
        %v364 = vpop.permute.xlu0 %363
        %v366 = vadd.f32 %v352, %v364
        %v367 = vadd.f32 %v354, %v364
        %vm368 = vcmp.gt.f32.partialorder %v361, 0.0
        %vm369 = vcmp.gt.f32.partialorder %v362, 0.0
        %v370 = vstv %s356
        %v371 = vmul.f32 %v370, %v361
        %v372 = vmul.f32 %v370, %v362
        %v373 = vsel %vm368, %v361, %v371
        %v374 = vsel %vm369, %v362, %v372
        %vm375 = vcmp.gt.f32.partialorder %v366, 0.0
        %vm376 = vcmp.gt.f32.partialorder %v367, 0.0
        %v377 = vmul.f32 %v370, %v366
        %v378 = vmul.f32 %v370, %v367
        %v379 = vsel %vm375, %v366, %v377
        %v380 = vsel %vm376, %v367, %v378
        %v381 = vpack.c.bf16 %v373, %v373
        %v382 = vpack.c.bf16 %v374, %v374
        %vm383 = vcmask 257024
        %384 = vst.msk [vmem:[%s311] sm:$0xf] %vm383, %v381
        %385 = vst.msk [vmem:[%s311 + $0x4] sm:$0xf] %vm383, %v382
        %v386 = vpack.c.bf16 %v379, %v379
        %v387 = vpack.c.bf16 %v380, %v380
        %390 = vrot.lane.b32.xlu0 %v386, 96
        %v391 = vpop.permute.xlu0 %390
        %392 = vrot.lane.b32.xlu0 %v387, 96
        %v393 = vpop.permute.xlu0 %392
        %396 = vst.msk [vmem:[%s318] sm:$0xf] %vm383, %v391
        %397 = vst.msk [vmem:[%s318 + $0x4] sm:$0xf] %vm383, %v393
        %s398 = sand.u32 %s148, 1
        %s399 = scalar_lea.sflag [#allocation5], %s398
        %s400 = sand.u32 %s148, 1
        %s401 = smul.addr %s400, 8
        %s402 = scalar_lea.vmem [#allocation8], %s401
        %s403 = sand.u32 %s176, 1
        %s404 = scalar_lea.sflag [#allocation10], %s403
        %s405 = sand.u32 %s176, 1
        %s406 = smul.addr %s405, 8
        %s407 = scalar_lea.vmem [#allocation9], %s406
        // Predicated region
        $region45: #{tpu_custom_call.1} parent=35 // pred_check
          %p408 = pneg %p158
        $region46: #{tpu_custom_call.1} parent=35 // pred_check_branch
          %410 = sbr.rel (%p408) target = $region48
        $region47: #{tpu_custom_call.1} parent=35 // pred_region
          %s411 = smul.u32 2, %s35
          %413 = vsyncadd %s399, 0
          %s414 = smul.addr %s34, 2
          %s415 = sadd.s32 %s411, %s414
          %s416 = smul.addr %s415, 4
          %s417 = scalar_lea.hbm %s4, %s416
          %s418 = sshll.u32 %s402, 4
          %s419 = int_to_ptr.vmem [resolvable:$true] %s418
          %s420 = sshll.u32 %s417, 4
          %s421 = int_to_ptr.hbm [resolvable:$true] %s420
          %426 = dma.vmem_to_hbm [thread:$0]  %s419, 128, %s421, %s399, 64, 64, 4
        $region48: #{tpu_custom_call.1} parent=35 // pred_fallthru
          _
        // Predicated region
        $region49: #{tpu_custom_call.1} parent=35 // pred_check
          %p427 = pneg %p186
        $region50: #{tpu_custom_call.1} parent=35 // pred_check_branch
          %429 = sbr.rel (%p427) target = $region52
        $region51: #{tpu_custom_call.1} parent=35 // pred_region
          %s430 = smul.u32 2, %s35
          %432 = vsyncadd %s404, 0
          %s433 = smul.addr %s34, 2
          %s434 = sadd.s32 %s430, %s433
          %s435 = smul.addr %s434, 4
          %s436 = scalar_lea.hbm %s5, %s435
          %s437 = sshll.u32 %s407, 4
          %s438 = int_to_ptr.vmem [resolvable:$true] %s437
          %s439 = sshll.u32 %s436, 4
          %s440 = int_to_ptr.hbm [resolvable:$true] %s439
          %445 = dma.vmem_to_hbm [thread:$0]  %s438, 128, %s440, %s404, 64, 64, 4
        $region52: #{tpu_custom_call.1} parent=35 // pred_fallthru
          _
      $region36: #{tpu_custom_call.1} parent=5 // pred_fallthru
        _
      %p446 = scmp.le.s32.totalorder 2, %s25
      // Predicated region
      $region53: #{tpu_custom_call.1} parent=5 // pred_check
        %p447 = pneg %p446
      $region54: #{tpu_custom_call.1} parent=5 // pred_check_branch
        %449 = sbr.rel (%p447) target = $region56
      $region55: #{tpu_custom_call.1} parent=5 // pred_region
        %s450 = ssub.s32 %s25, 2
        // Predicated region
        $region57: #{tpu_custom_call.1} parent=55 // pred_check
          %p451 = pneg %p164
        $region58: #{tpu_custom_call.1} parent=55 // pred_check_branch
          %453 = sbr.rel (%p451) target = $region60
        $region59: #{tpu_custom_call.1} parent=55 // pred_region
          %s454 = sand.u32 %s149, 1
          %s455 = scalar_lea.sflag [#allocation5], %s454
          %s456 = sand.u32 %s149, 1
          %s457 = smul.addr %s456, 8
          %s458 = scalar_lea.vmem [#allocation8], %s457
          %460 = dma.done %s455, 128
        $region60: #{tpu_custom_call.1} parent=55 // pred_fallthru
          _
        // Predicated region
        $region61: #{tpu_custom_call.1} parent=55 // pred_check
          %p461 = pneg %p192
        $region62: #{tpu_custom_call.1} parent=55 // pred_check_branch
          %463 = sbr.rel (%p461) target = $region64
        $region63: #{tpu_custom_call.1} parent=55 // pred_region
          %s464 = sand.u32 %s177, 1
          %s465 = scalar_lea.sflag [#allocation10], %s464
          %s466 = sand.u32 %s177, 1
          %s467 = smul.addr %s466, 8
          %s468 = scalar_lea.vmem [#allocation9], %s467
          %470 = dma.done %s465, 128
        $region64: #{tpu_custom_call.1} parent=55 // pred_fallthru
          _
      $region56: #{tpu_custom_call.1} parent=5 // pred_fallthru
        _
    $region6: #{tpu_custom_call.1} parent=1 // loop_footer
      %s29 = sadd.s32 1, %s25
    $region7: #{tpu_custom_call.1} parent=1 // loop_footer_branch
      %24 = sbr.rel target = $region3
    $region8: #{tpu_custom_call.1} parent=1 // loop_exit
      _
    %471 = vsyncpa [#allocation4], 1
    %s472 = scalar_lea.sflag [#allocation4], 1
    %473 = vsyncpa %s472, 1
    %474 = vsyncpa [#allocation7], 1
    %s475 = scalar_lea.sflag [#allocation7], 1
    %476 = vsyncpa %s475, 1
    %477 = vsyncpa [#allocation5], 1
    %s478 = scalar_lea.sflag [#allocation5], 1
    %479 = vsyncpa %s478, 1
    %480 = vsyncpa [#allocation10], 1
    %s481 = scalar_lea.sflag [#allocation10], 1
    %482 = vsyncpa %s481, 1

</llo_original>
